<compile_context>
chip_gen: v7x
topology: tpu7x:2x2x1
jax: 0.10.0
libtpu: 0.0.40
codegen_flags: <defaults>
</compile_context>

<pallas_src>
import functools
import math

import jax
import jax.numpy as jnp
from jax.experimental import pallas as pl
from jax.experimental.pallas import tpu as pltpu

_SQRT_HALF = 1.0 / math.sqrt(2.0)


def _round_up(a, b):
    return (a + b - 1) // b * b


def _vmem_limit_bytes():
    """Generation-aware VMEM limit: ~100 MiB on 128-MiB parts, ~52 MiB on v7x."""
    try:
        cap = pltpu.get_tpu_info().vmem_capacity_bytes
    except Exception:
        cap = 64 * 1024 * 1024  # unknown chip / interpret mode: be conservative
    if cap >= 96 * 1024 * 1024:          # v5e / v6e (128 MiB physical VMEM)
        return 100 * 1024 * 1024
    return 52 * 1024 * 1024              # v7x (64 MiB per TensorCore)


def _pick_hidden_tile(hidden, target):
    """Largest tile <= target dividing H; prefer 256-multiples (2x256^2 MXU)."""
    if hidden <= target:
        return hidden
    for step in (256, 128):
        t = (target // step) * step
        while t >= step:
            if hidden % t == 0:
                return t
            t -= step
    return hidden


def _gelu_exact(h):
    # exact (erf) GELU == torch.nn.GELU() default; f32 epilogue.
    return 0.5 * h * (1.0 + jax.lax.erf(h * _SQRT_HALF))


# ---------------------------------------------------------------------------
# Kernels
# ---------------------------------------------------------------------------
def _mlp_kernel_resident(x_ref, w1_ref, b1_ref, w2_ref, b2_ref, o_ref, *,
                         compute_dtype):
    """Weights fully VMEM-resident: 1-D grid over row tiles, no accumulator."""
    xc = x_ref[...].astype(compute_dtype)          # in-kernel cast (VALU filler)
    h = jnp.dot(xc, w1_ref[...], preferred_element_type=jnp.float32)
    h = _gelu_exact(h + b1_ref[...])               # f32 bias + exact GELU
    # dropout(p=0.0) is the identity
    out = jnp.dot(h.astype(compute_dtype), w2_ref[...],
                  preferred_element_type=jnp.float32)
    o_ref[...] = (out + b2_ref[...]).astype(o_ref.dtype)


def _mlp_kernel_htiled(x_ref, w1_ref, b1_ref, w2_ref, b2_ref, o_ref, acc_ref, *,
                       compute_dtype):
    """Hidden dim tiled as reduction axis; partial fc2 products in f32 scratch."""
    k = pl.program_id(1)

    @pl.when(k == 0)
    def _init():
        acc_ref[...] = jnp.zeros_like(acc_ref)

    xc = x_ref[...].astype(compute_dtype)
    h = jnp.dot(xc, w1_ref[...], preferred_element_type=jnp.float32)
    h = _gelu_exact(h + b1_ref[...])
    # dropout(p=0.0) is the identity
    acc_ref[...] += jnp.dot(h.astype(compute_dtype), w2_ref[...],
                            preferred_element_type=jnp.float32)

    @pl.when(k == pl.num_programs(1) - 1)
    def _finalize():
        o_ref[...] = (acc_ref[...] + b2_ref[...]).astype(o_ref.dtype)


# ---------------------------------------------------------------------------
# Tile sizing
# ---------------------------------------------------------------------------
def _resident_row_tile(M, D, H, O, x_b, out_b, w_b, budget):
    """Largest row tile whose weights-resident working set fits, else None."""
    tm_cap = max(8, _round_up(M, 8))
    weights = 2 * w_b * (D * H + H * O)       # conservative: assume double-buffered
    biases = 2 * 4 * (H + O)
    for cand in (1024, 768, 640, 512, 384, 256, 128, 64, 32, 16, 8):
        tm = min(cand, tm_cap)
        need = (weights + biases
                + 2 * tm * D * x_b            # x tiles (double-buffered)
                + 2 * tm * O * out_b          # output tiles
                + 2 * tm * H * 4)             # f32 fc1 intermediate + GELU temps
        if need <= budget:
            return tm
    return None


def _htiled_tiles(M, D, H, O, x_b, out_b, w_b, budget, big_vmem):
    tm0 = 1024 if big_vmem else 640           # per-core on v7x (megacore splits M)
    th0 = 1024 if big_vmem else 512
    tm_cap = max(8, _round_up(M, 8))
    cands = [c for c in (1024, 768, 640, 512, 384, 256, 128, 64, 32, 16, 8)
             if c <= tm0]
    for th_target in (th0, th0 // 2, 256, 128):
        th = _pick_hidden_tile(H, max(128, th_target))
        for cand in cands:
            tm = min(cand, tm_cap)
            need = (2 * tm * D * x_b + 2 * D * th * w_b + 2 * th * O * w_b
                    + 2 * tm * O * out_b + tm * O * 4 + 2 * tm * th * 4
                    + 2 * 4 * (th + O))
            if need <= budget:
                return tm, th
    return min(128, tm_cap), _pick_hidden_tile(H, 128)


# ---------------------------------------------------------------------------
# Wrapper
# ---------------------------------------------------------------------------
def mlp_pallas(x, w1, b1, w2, b2, *, compute_dtype=jnp.bfloat16,
               weights_resident=None, vmem_limit_bytes=None):
    """Fused MLP: GELU(x @ w1 + b1) @ w2 + b2.

    x: [..., D]; w1: [D, H]; b1: [H]; w2: [H, O]; b2: [O] -> [..., O].
    Pre-cast w1/w2 to `compute_dtype` at parameter-load time so the per-call
    cast below is a no-op.
    """
    *lead, D = x.shape
    H = w1.shape[1]
    O = w2.shape[1]
    M = 1
    for s in lead:
        M *= s
    out_dtype = x.dtype

    if vmem_limit_bytes is None:
        vmem_limit_bytes = _vmem_limit_bytes()
    big_vmem = vmem_limit_bytes >= 96 * 1024 * 1024
    budget = int(0.8 * vmem_limit_bytes)

    x2d = x.reshape(M, D)                                  # no cast, no pad
    w1c = w1 if w1.dtype == compute_dtype else w1.astype(compute_dtype)
    w2c = w2 if w2.dtype == compute_dtype else w2.astype(compute_dtype)
    b1f = b1.astype(jnp.float32).reshape(1, H)
    b2f = b2.astype(jnp.float32).reshape(1, O)

    x_b = x2d.dtype.itemsize
    w_b = jnp.dtype(compute_dtype).itemsize
    out_b = jnp.dtype(out_dtype).itemsize

    tm_resident = _resident_row_tile(M, D, H, O, x_b, out_b, w_b, budget)
    if weights_resident is None:
        weights_resident = tm_resident is not None
    if weights_resident and tm_resident is None:
        raise ValueError(
            "weights do not fit the VMEM budget; use weights_resident=False")

    cost = pl.CostEstimate(
        flops=2 * M * H * (D + O),
        transcendentals=M * H,
        bytes_accessed=(M * D * x_b + (D * H + H * O) * w_b
                        + 4 * (H + O) + M * O * out_b),
    )

    if weights_resident:
        tm = tm_resident
        kernel = functools.partial(_mlp_kernel_resident,
                                   compute_dtype=compute_dtype)
        out = pl.pallas_call(
            kernel,
            out_shape=jax.ShapeDtypeStruct((M, O), out_dtype),
            grid_spec=pltpu.PrefetchScalarGridSpec(
                num_scalar_prefetch=0,
                grid=(pl.cdiv(M, tm),),
                in_specs=[
                    pl.BlockSpec((tm, D), lambda i: (i, 0)),   # x row tile
                    pl.BlockSpec((D, H), lambda i: (0, 0)),    # w1: fetched once
                    pl.BlockSpec((1, H), lambda i: (0, 0)),    # b1
                    pl.BlockSpec((H, O), lambda i: (0, 0)),    # w2: fetched once
                    pl.BlockSpec((1, O), lambda i: (0, 0)),    # b2
                ],
                out_specs=pl.BlockSpec((tm, O), lambda i: (i, 0)),
            ),
            compiler_params=pltpu.CompilerParams(
                dimension_semantics=("parallel",),
                vmem_limit_bytes=vmem_limit_bytes,
            ),
            cost_estimate=cost,
        )(x2d, w1c, b1f, w2c, b2f)
    else:
        tm, th = _htiled_tiles(M, D, H, O, x_b, out_b, w_b, budget, big_vmem)
        kernel = functools.partial(_mlp_kernel_htiled,
                                   compute_dtype=compute_dtype)
        out = pl.pallas_call(
            kernel,
            out_shape=jax.ShapeDtypeStruct((M, O), out_dtype),
            grid_spec=pltpu.PrefetchScalarGridSpec(
                num_scalar_prefetch=0,
                grid=(pl.cdiv(M, tm), H // th),
                in_specs=[
                    pl.BlockSpec((tm, D), lambda i, k: (i, 0)),   # x row tile
                    pl.BlockSpec((D, th), lambda i, k: (0, k)),   # fc1 weight tile
                    pl.BlockSpec((1, th), lambda i, k: (0, k)),   # fc1 bias tile
                    pl.BlockSpec((th, O), lambda i, k: (k, 0)),   # fc2 weight tile
                    pl.BlockSpec((1, O), lambda i, k: (0, 0)),    # fc2 bias
                ],
                out_specs=pl.BlockSpec((tm, O), lambda i, k: (i, 0)),
                scratch_shapes=[pltpu.VMEM((tm, O), jnp.float32)],
            ),
            compiler_params=pltpu.CompilerParams(
                dimension_semantics=("parallel", "arbitrary"),
                vmem_limit_bytes=vmem_limit_bytes,
            ),
            cost_estimate=cost,
        )(x2d, w1c, b1f, w2c, b2f)

    return out.reshape(*lead, O)


# ---------------------------------------------------------------------------
# Reference & test harness
# ---------------------------------------------------------------------------
def _reference_mlp(x, w1, b1, w2, b2):
    hp = jax.lax.Precision.HIGHEST
    h = jnp.einsum("...d,dh->...h", x, w1, precision=hp) + b1
    h = 0.5 * h * (1.0 + jax.lax.erf(h / jnp.sqrt(2.0).astype(h.dtype)))
    return jnp.einsum("...h,ho->...o", h, w2, precision=hp) + b2


def _make_params(key, D, H, O):
    kw1, kb1, kw2, kb2 = jax.random.split(key, 4)
    bound1 = 1.0 / math.sqrt(D)
    bound2 = 1.0 / math.sqrt(H)
    w1 = jax.random.uniform(kw1, (D, H), minval=-bound1, maxval=bound1, dtype=jnp.float32)
    b1 = jax.random.uniform(kb1, (H,), minval=-bound1, maxval=bound1, dtype=jnp.float32)
    w2 = jax.random.uniform(kw2, (H, O), minval=-bound2, maxval=bound2, dtype=jnp.float32)
    b2 = jax.random.uniform(kb2, (O,), minval=-bound2, maxval=bound2, dtype=jnp.float32)
    return w1, b1, w2, b2


if __name__ == "__main__":
    key = jax.random.PRNGKey(0)
    k1, k2, k3, kx1, kx2, kx3 = jax.random.split(key, 6)

    # Case 1: tiny ViT-style block -> weights-resident fast path, single row tile.
    B, N, D, H, O = 2, 8, 32, 64, 32
    x = jax.random.normal(kx1, (B, N, D), dtype=jnp.float32)
    w1, b1, w2, b2 = _make_params(k1, D, H, O)
    w1_bf, w2_bf = w1.astype(jnp.bfloat16), w2.astype(jnp.bfloat16)  # pre-cast once
    ref = _reference_mlp(x, w1, b1, w2, b2)

    out_f32 = jax.block_until_ready(
        mlp_pallas(x, w1, b1, w2, b2, compute_dtype=jnp.float32))
    out_bf16 = jax.block_until_ready(mlp_pallas(x, w1_bf, b1, w2_bf, b2))
    assert out_f32.shape == (B, N, O)
    assert jnp.allclose(out_f32, ref, atol=1e-4, rtol=1e-4), "f32 mismatch (case 1)"
    assert jnp.allclose(out_bf16, ref, atol=3e-2, rtol=3e-2), "bf16 mismatch (case 1)"

    # Case 2: ragged token count (M=400), larger hidden dim.  Exercise both the
    # auto weights-resident path and the forced H-tiled path (f32 accumulator,
    # multi-step reduction over H).
    B, N, D, H, O = 2, 200, 128, 1280, 128
    x = jax.random.normal(kx2, (B, N, D), dtype=jnp.float32)
    w1, b1, w2, b2 = _make_params(k2, D, H, O)
    w1_bf, w2_bf = w1.astype(jnp.bfloat16), w2.astype(jnp.bfloat16)
    ref = _reference_mlp(x, w1, b1, w2, b2)

    out_res = jax.block_until_ready(mlp_pallas(x, w1_bf, b1, w2_bf, b2))
    out_ht_f32 = jax.block_until_ready(
        mlp_pallas(x, w1, b1, w2, b2, compute_dtype=jnp.float32,
                   weights_resident=False))
    out_ht_bf16 = jax.block_until_ready(
        mlp_pallas(x, w1_bf, b1, w2_bf, b2, weights_resident=False))
    assert out_res.shape == (B, N, O)
    assert jnp.allclose(out_res, ref, atol=4e-2, rtol=4e-2), "bf16 resident mismatch (case 2)"
    assert jnp.allclose(out_ht_f32, ref, atol=2e-3, rtol=2e-3), "f32 H-tiled mismatch (case 2)"
    assert jnp.allclose(out_ht_bf16, ref, atol=4e-2, rtol=4e-2), "bf16 H-tiled mismatch (case 2)"

    # Case 3: M=1300 (> row tile, not a multiple of 8) -> multi-row-tile grid
    # with a partially out-of-bounds last block (masked writeback, no wrapper pad).
    B, N, D, H, O = 2, 650, 64, 128, 64
    x = jax.random.normal(kx3, (B, N, D), dtype=jnp.float32)
    w1, b1, w2, b2 = _make_params(k3, D, H, O)
    ref = _reference_mlp(x, w1, b1, w2, b2)
    out_f32 = jax.block_until_ready(
        mlp_pallas(x, w1, b1, w2, b2, compute_dtype=jnp.float32))
    assert out_f32.shape == (B, N, O)
    assert jnp.allclose(out_f32, ref, atol=1e-3, rtol=1e-3), "f32 mismatch (case 3)"

    print("KERNEL_OK")
</pallas_src>

<mosaic_0001>
module attributes {stable_mosaic.version = 11 : i64} {
  func.func @_mlp_kernel_resident(%arg0: i32, %arg1: memref<16x32xf32, #tpu.memory_space<vmem>>, %arg2: memref<32x64xf32, #tpu.memory_space<vmem>>, %arg3: memref<1x64xf32, #tpu.memory_space<vmem>>, %arg4: memref<64x32xf32, #tpu.memory_space<vmem>>, %arg5: memref<1x32xf32, #tpu.memory_space<vmem>>, %arg6: memref<16x32xf32, #tpu.memory_space<vmem>>) attributes {dimension_semantics = [#tpu.dimension_semantics<parallel>], iteration_bounds = array<i64: 1>, scalar_prefetch = 0 : i64, scratch_operands = 0 : i64, tpu.core_type = #tpu.core_type<tc>, window_params = [{transform_indices = @transform_0, window_bounds = array<i64: 16, 32>}, {pipeline_mode = #tpu.pipeline_mode<synchronous>, transform_indices = @transform_1, window_bounds = array<i64: 32, 64>}, {pipeline_mode = #tpu.pipeline_mode<synchronous>, transform_indices = @transform_2, window_bounds = array<i64: 1, 64>}, {pipeline_mode = #tpu.pipeline_mode<synchronous>, transform_indices = @transform_3, window_bounds = array<i64: 64, 32>}, {pipeline_mode = #tpu.pipeline_mode<synchronous>, transform_indices = @transform_4, window_bounds = array<i64: 1, 32>}, {transform_indices = @transform_5, window_bounds = array<i64: 16, 32>}]} {
    %c0 = arith.constant 0 : index
    %c0_0 = arith.constant 0 : index
    %0 = vector.load %arg1[%c0, %c0_0] : memref<16x32xf32, #tpu.memory_space<vmem>>, vector<16x32xf32>
    %c0_1 = arith.constant 0 : index
    %c0_2 = arith.constant 0 : index
    %1 = vector.load %arg2[%c0_1, %c0_2] : memref<32x64xf32, #tpu.memory_space<vmem>>, vector<32x64xf32>
    %cst = arith.constant dense<0.000000e+00> : vector<16x64xf32>
    %2 = tpu.matmul %0, %1, %cst {dimension_numbers = #tpu.dot_dimension_numbers<[1], [0], [0], [1], [0, 0, 1, 1], [], []>} : vector<16x32xf32>, vector<32x64xf32>, vector<16x64xf32> -> vector<16x64xf32>
    %c0_3 = arith.constant 0 : index
    %c0_4 = arith.constant 0 : index
    %3 = vector.load %arg3[%c0_3, %c0_4] : memref<1x64xf32, #tpu.memory_space<vmem>>, vector<1x64xf32>
    %4 = vector.broadcast %3 : vector<1x64xf32> to vector<16x64xf32>
    %5 = arith.addf %2, %4 : vector<16x64xf32>
    %cst_5 = arith.constant 5.000000e-01 : f32
    %6 = vector.broadcast %cst_5 : f32 to vector<16x64xf32>
    %7 = arith.mulf %6, %5 : vector<16x64xf32>
    %cst_6 = arith.constant 0.707106769 : f32
    %8 = vector.broadcast %cst_6 : f32 to vector<16x64xf32>
    %9 = arith.mulf %5, %8 : vector<16x64xf32>
    %10 = math.erf %9 : vector<16x64xf32>
    %cst_7 = arith.constant 1.000000e+00 : f32
    %11 = vector.broadcast %cst_7 : f32 to vector<16x64xf32>
    %12 = arith.addf %11, %10 : vector<16x64xf32>
    %13 = arith.mulf %7, %12 : vector<16x64xf32>
    %c0_8 = arith.constant 0 : index
    %c0_9 = arith.constant 0 : index
    %14 = vector.load %arg4[%c0_8, %c0_9] : memref<64x32xf32, #tpu.memory_space<vmem>>, vector<64x32xf32>
    %cst_10 = arith.constant dense<0.000000e+00> : vector<16x32xf32>
    %15 = tpu.matmul %13, %14, %cst_10 {dimension_numbers = #tpu.dot_dimension_numbers<[1], [0], [0], [1], [0, 0, 1, 1], [], []>} : vector<16x64xf32>, vector<64x32xf32>, vector<16x32xf32> -> vector<16x32xf32>
    %c0_11 = arith.constant 0 : index
    %c0_12 = arith.constant 0 : index
    %16 = vector.load %arg5[%c0_11, %c0_12] : memref<1x32xf32, #tpu.memory_space<vmem>>, vector<1x32xf32>
    %17 = vector.broadcast %16 : vector<1x32xf32> to vector<16x32xf32>
    %18 = arith.addf %15, %17 : vector<16x32xf32>
    %c0_13 = arith.constant 0 : index
    %c0_14 = arith.constant 0 : index
    %19 = vector.load %arg6[%c0_13, %c0_14] : memref<16x32xf32, #tpu.memory_space<vmem>>, vector<16x32xf32>
    tpu.vector_store %arg6[%c0_13, %c0_14], %18 {strides = array<i32>} : memref<16x32xf32, #tpu.memory_space<vmem>>, vector<16x32xf32>,
    return
  }
  func.func @transform_0(%arg0: i32) -> (i32, i32) {
    %c0_i32 = arith.constant 0 : i32
    %c0_i32_0 = arith.constant 0 : i32
    return %arg0, %c0_i32 : i32, i32
  }
  func.func @transform_1(%arg0: i32) -> (i32, i32) {
    %c0_i32 = arith.constant 0 : i32
    %c0_i32_0 = arith.constant 0 : i32
    %c0_i32_1 = arith.constant 0 : i32
    return %c0_i32, %c0_i32_0 : i32, i32
  }
  func.func @transform_2(%arg0: i32) -> (i32, i32) {
    %c0_i32 = arith.constant 0 : i32
    %c0_i32_0 = arith.constant 0 : i32
    %c0_i32_1 = arith.constant 0 : i32
    return %c0_i32, %c0_i32_0 : i32, i32
  }
  func.func @transform_3(%arg0: i32) -> (i32, i32) {
    %c0_i32 = arith.constant 0 : i32
    %c0_i32_0 = arith.constant 0 : i32
    %c0_i32_1 = arith.constant 0 : i32
    return %c0_i32, %c0_i32_0 : i32, i32
  }
  func.func @transform_4(%arg0: i32) -> (i32, i32) {
    %c0_i32 = arith.constant 0 : i32
    %c0_i32_0 = arith.constant 0 : i32
    %c0_i32_1 = arith.constant 0 : i32
    return %c0_i32, %c0_i32_0 : i32, i32
  }
  func.func @transform_5(%arg0: i32) -> (i32, i32) {
    %c0_i32 = arith.constant 0 : i32
    %c0_i32_0 = arith.constant 0 : i32
    return %arg0, %c0_i32 : i32, i32
  }
}

</mosaic_0001>

<llo_original>
// kernel: tpu_custom_call.1
$region0: #{tpu_custom_call.1}
  #allocation0 [shape = 'u32[]', space=smem, size = 0x4, offset = 0x4, fixed_abs, tag = 'smem constant byte address 0x4 - core index']
  #allocation1 [shape = 'u32[144,128]{1,0:T(1,128)}', space=vmem, size = 0x12000, scoped, tag = 'internal scratch']
  %s0 = inlined_call_operand.vmem [shape: f32[16,32], index: 0, kind: input, shape index: {}]
  %s1 = inlined_call_operand.vmem [shape: f32[32,64], index: 1, kind: input, shape index: {}]
  %s2 = inlined_call_operand.vmem [shape: f32[1,64], index: 2, kind: input, shape index: {}]
  %s3 = inlined_call_operand.vmem [shape: f32[64,32], index: 3, kind: input, shape index: {}]
  %s4 = inlined_call_operand.vmem [shape: f32[1,32], index: 4, kind: input, shape index: {}]
  %s5 = inlined_call_operand.hbm [shape: f32[16,32], index: 5, kind: output, shape index: {}]
  %s6 = sld [smem:[#allocation0]]
  $region30: #{tpu_custom_call.1} parent=0
    _
  %s8 = ssub.s32 1, %s6
  %s9 = scalar_select 0, %s8, %s6
  $region1: #{tpu_custom_call.1} parent=0
    #allocation2 [shape = 'u8[8192]{0}', space=vmem, size = 0x2000, scoped, tag = 'output window, operand 0, single buffered']
    #allocation3 [shape = 's32[1]{0}', space=sflag, size = 0x4, scoped, tag = 'scoped memory for tpu_custom_call.1']
    %10 = vsyncpa [#allocation3], 0
    // Predicated region
    $region2: #{tpu_custom_call.1} parent=1 // pred_check
      _
    $region3: #{tpu_custom_call.1} parent=1 // pred_check_branch
      %12 = sbr.rel (0) target = $region5
    $region4: #{tpu_custom_call.1} parent=1 // pred_region
      _
    $region5: #{tpu_custom_call.1} parent=1 // pred_fallthru
      _
    // Predicated region
    $region6: #{tpu_custom_call.1} parent=1 // pred_check
      _
    $region7: #{tpu_custom_call.1} parent=1 // pred_check_branch
      %14 = sbr.rel (0) target = $region9
    $region8: #{tpu_custom_call.1} parent=1 // pred_region
      _
    $region9: #{tpu_custom_call.1} parent=1 // pred_fallthru
      _
    // Predicated region
    $region10: #{tpu_custom_call.1} parent=1 // pred_check
      _
    $region11: #{tpu_custom_call.1} parent=1 // pred_check_branch
      %16 = sbr.rel (0) target = $region13
    $region12: #{tpu_custom_call.1} parent=1 // pred_region
      _
    $region13: #{tpu_custom_call.1} parent=1 // pred_fallthru
      _
    // Predicated region
    $region14: #{tpu_custom_call.1} parent=1 // pred_check
      _
    $region15: #{tpu_custom_call.1} parent=1 // pred_check_branch
      %18 = sbr.rel (0) target = $region17
    $region16: #{tpu_custom_call.1} parent=1 // pred_region
      _
    $region17: #{tpu_custom_call.1} parent=1 // pred_fallthru
      _
    // Predicated region
    $region18: #{tpu_custom_call.1} parent=1 // pred_check
      _
    $region19: #{tpu_custom_call.1} parent=1 // pred_check_branch
      %20 = sbr.rel (0) target = $region21
    $region20: #{tpu_custom_call.1} parent=1 // pred_region
      _
    $region21: #{tpu_custom_call.1} parent=1 // pred_fallthru
      _
    %v21 = vld [vmem:[%s0] sm:$0xff]
    %v22 = vld [vmem:[%s0 + $0x8] sm:$0xff]
    %v23 = vld [vmem:[%s1] sm:$0xff]
    %v24 = vld [vmem:[%s1 + $0x8] sm:$0xff]
    %v25 = vld [vmem:[%s1 + $0x10] sm:$0xff]
    %v26 = vld [vmem:[%s1 + $0x18] sm:$0xff]
    %v27 = vld [vmem:[%s2] sm:$0x1]
    %v29 = vlaneseq
    %v30 = vshrl.u32 %v29, 7
    %v31 = vsub.s32 0, %v30
    %v32 = vrot.slane %v27, %v31
    %vm34 = vcmask 261120
    %v36 = vsel %vm34, %v21, 0
    %v39 = vsel %vm34, %v22, 0
    %41 = vmatprep.subr.mxu0 0.0
    %42 = vmatpush1.msra.mxu0 %v23
    %43 = vmatprep.subr.mxu0 0.0
    %44 = vmatpush1.msra.mxu0 %v24
    %45 = vmatprep.subr.mxu0 0.0
    %46 = vmatpush1.msra.mxu0 %v25
    %47 = vmatprep.subr.mxu0 0.0
    %48 = vmatpush1.msra.mxu0 %v26
    %49 = vmatprep.subr.mxu0 0.0
    %50 = vmatpush1.msra.mxu0 0.0
    %51 = vmatprep.subr.mxu0 0.0
    %52 = vmatpush1.msra.mxu0 0.0
    %53 = vmatprep.subr.mxu0 0.0
    %54 = vmatpush1.msra.mxu0 0.0
    %55 = vmatprep.subr.mxu0 0.0
    %56 = vmatpush1.msra.mxu0 0.0
    %57 = vmatprep.subr.mxu0 0.0
    %58 = vmatpush1.msra.mxu0 0.0
    %59 = vmatprep.subr.mxu0 0.0
    %60 = vmatpush1.msra.mxu0 0.0
    %61 = vmatprep.subr.mxu0 0.0
    %62 = vmatpush1.msra.mxu0 0.0
    %63 = vmatprep.subr.mxu0 0.0
    %64 = vmatpush1.msra.mxu0 0.0
    %65 = vmatprep.subr.mxu0 0.0
    %66 = vmatpush1.msra.mxu0 0.0
    %67 = vmatprep.subr.mxu0 0.0
    %68 = vmatpush1.msra.mxu0 0.0
    %69 = vmatprep.subr.mxu0 0.0
    %70 = vmatpush1.msra.mxu0 0.0
    %71 = vmatprep.subr.mxu0 0.0
    %72 = vmatpush1.msra.mxu0 0.0
    %73 = vmatprep.subr.mxu0 0.0
    %74 = vmatpush1.msra.mxu0 0.0
    %75 = vmatprep.subr.mxu0 0.0
    %76 = vmatpush1.msra.mxu0 0.0
    %77 = vmatprep.subr.mxu0 0.0
    %78 = vmatpush1.msra.mxu0 0.0
    %79 = vmatprep.subr.mxu0 0.0
    %80 = vmatpush1.msra.mxu0 0.0
    %81 = vmatprep.subr.mxu0 0.0
    %82 = vmatpush1.msra.mxu0 0.0
    %83 = vmatprep.subr.mxu0 0.0
    %84 = vmatpush1.msra.mxu0 0.0
    %85 = vmatprep.subr.mxu0 0.0
    %86 = vmatpush1.msra.mxu0 0.0
    %87 = vmatprep.subr.mxu0 0.0
    %88 = vmatpush1.msra.mxu0 0.0
    %89 = vmatprep.subr.mxu0 0.0
    %90 = vmatpush1.msra.mxu0 0.0
    %91 = vmatprep.subr.mxu0 0.0
    %92 = vmatpush1.msra.mxu0 0.0
    %93 = vmatprep.subr.mxu0 0.0
    %94 = vmatpush1.msra.mxu0 0.0
    %95 = vmatprep.subr.mxu0 0.0
    %96 = vmatpush1.msra.mxu0 0.0
    %97 = vmatprep.subr.mxu0 0.0
    %98 = vmatpush1.msra.mxu0 0.0
    %99 = vmatprep.subr.mxu0 0.0
    %100 = vmatpush1.msra.mxu0 0.0
    %101 = vmatprep.subr.mxu0 0.0
    %102 = vmatpush1.msra.mxu0 0.0
    %103 = vmatprep.subr.mxu0 0.0
    %104 = vmatpush1.msra.mxu0 0.0
    %105 = vmatprep.mubr.f32.mxu0 0.0
    %106 = vmatmul.mubr.f32.gmra.mrb[0].mxu0 %v36
    %v107 = vpop.f32.mrb[0].mxu0
    %v108 = vadd.f32 %v32, %v107
    %v109 = vpop.f32.mrb[0].mxu0
    %110 = vmatprep.mubr.f32.mxu0 0.0
    %111 = vmatmul.mubr.f32.gmra.mrb[0].mxu0 %v39
    %v112 = vpop.f32.mrb[0].mxu0
    %v113 = vadd.f32 %v32, %v112
    %v114 = vpop.f32.mrb[0].mxu0
    %115 = vdwg.mxu0
    %v116 = vmul.f32 %v108, 0.5
    %v117 = vmul.f32 %v113, 0.5
    %v118 = vmul.f32 %v108, 0.70710677
    %v119 = vmul.f32 %v113, 0.70710677
    %v120 = verf.f32.pop %v118
    %v121 = verf.f32.pop %v119
    %v122 = vadd.f32 %v120, 1.0
    %v123 = vadd.f32 %v121, 1.0
    %v124 = vmul.f32 %v116, %v122
    %v125 = vmul.f32 %v117, %v123
    %v126 = vld [vmem:[%s3] sm:$0xff]
    %v127 = vld [vmem:[%s3 + $0x8] sm:$0xff]
    %v128 = vld [vmem:[%s3 + $0x10] sm:$0xff]
    %v129 = vld [vmem:[%s3 + $0x18] sm:$0xff]
    %v130 = vld [vmem:[%s3 + $0x20] sm:$0xff]
    %v131 = vld [vmem:[%s3 + $0x28] sm:$0xff]
    %v132 = vld [vmem:[%s3 + $0x30] sm:$0xff]
    %v133 = vld [vmem:[%s3 + $0x38] sm:$0xff]
    %v134 = vld [vmem:[%s4] sm:$0x1]
    %v136 = vlaneseq
    %v137 = vshrl.u32 %v136, 7
    %v138 = vsub.s32 0, %v137
    %v139 = vrot.slane %v134, %v138
    %vm141 = vcmask 523264
    %v143 = vsel %vm141, %v124, 0
    %v146 = vsel %vm141, %v125, 0
    %148 = vmatprep.subr.mxu0 0.0
    %149 = vmatpush1.msra.mxu0 %v126
    %150 = vmatprep.subr.mxu0 0.0
    %151 = vmatpush1.msra.mxu0 %v127
    %152 = vmatprep.subr.mxu0 0.0
    %153 = vmatpush1.msra.mxu0 %v128
    %154 = vmatprep.subr.mxu0 0.0
    %155 = vmatpush1.msra.mxu0 %v129
    %156 = vmatprep.subr.mxu0 0.0
    %157 = vmatpush1.msra.mxu0 %v130
    %158 = vmatprep.subr.mxu0 0.0
    %159 = vmatpush1.msra.mxu0 %v131
    %160 = vmatprep.subr.mxu0 0.0
    %161 = vmatpush1.msra.mxu0 %v132
    %162 = vmatprep.subr.mxu0 0.0
    %163 = vmatpush1.msra.mxu0 %v133
    %164 = vmatprep.subr.mxu0 0.0
    %165 = vmatpush1.msra.mxu0 0.0
    %166 = vmatprep.subr.mxu0 0.0
    %167 = vmatpush1.msra.mxu0 0.0
    %168 = vmatprep.subr.mxu0 0.0
    %169 = vmatpush1.msra.mxu0 0.0
    %170 = vmatprep.subr.mxu0 0.0
    %171 = vmatpush1.msra.mxu0 0.0
    %172 = vmatprep.subr.mxu0 0.0
    %173 = vmatpush1.msra.mxu0 0.0
    %174 = vmatprep.subr.mxu0 0.0
    %175 = vmatpush1.msra.mxu0 0.0
    %176 = vmatprep.subr.mxu0 0.0
    %177 = vmatpush1.msra.mxu0 0.0
    %178 = vmatprep.subr.mxu0 0.0
    %179 = vmatpush1.msra.mxu0 0.0
    %180 = vmatprep.subr.mxu0 0.0
    %181 = vmatpush1.msra.mxu0 0.0
    %182 = vmatprep.subr.mxu0 0.0
    %183 = vmatpush1.msra.mxu0 0.0
    %184 = vmatprep.subr.mxu0 0.0
    %185 = vmatpush1.msra.mxu0 0.0
    %186 = vmatprep.subr.mxu0 0.0
    %187 = vmatpush1.msra.mxu0 0.0
    %188 = vmatprep.subr.mxu0 0.0
    %189 = vmatpush1.msra.mxu0 0.0
    %190 = vmatprep.subr.mxu0 0.0
    %191 = vmatpush1.msra.mxu0 0.0
    %192 = vmatprep.subr.mxu0 0.0
    %193 = vmatpush1.msra.mxu0 0.0
    %194 = vmatprep.subr.mxu0 0.0
    %195 = vmatpush1.msra.mxu0 0.0
    %196 = vmatprep.subr.mxu0 0.0
    %197 = vmatpush1.msra.mxu0 0.0
    %198 = vmatprep.subr.mxu0 0.0
    %199 = vmatpush1.msra.mxu0 0.0
    %200 = vmatprep.subr.mxu0 0.0
    %201 = vmatpush1.msra.mxu0 0.0
    %202 = vmatprep.subr.mxu0 0.0
    %203 = vmatpush1.msra.mxu0 0.0
    %204 = vmatprep.subr.mxu0 0.0
    %205 = vmatpush1.msra.mxu0 0.0
    %206 = vmatprep.subr.mxu0 0.0
    %207 = vmatpush1.msra.mxu0 0.0
    %208 = vmatprep.subr.mxu0 0.0
    %209 = vmatpush1.msra.mxu0 0.0
    %210 = vmatprep.subr.mxu0 0.0
    %211 = vmatpush1.msra.mxu0 0.0
    %212 = vmatprep.mubr.f32.mxu0 0.0
    %213 = vmatmul.mubr.f32.gmra.mrb[0].mxu0 %v143
    %v214 = vpop.f32.mrb[0].mxu0
    %v215 = vadd.f32 %v139, %v214
    %v216 = vpop.f32.mrb[0].mxu0
    %217 = vmatprep.mubr.f32.mxu0 0.0
    %218 = vmatmul.mubr.f32.gmra.mrb[0].mxu0 %v146
    %v219 = vpop.f32.mrb[0].mxu0
    %v220 = vadd.f32 %v139, %v219
    %v221 = vpop.f32.mrb[0].mxu0
    %222 = vdwg.mxu0
    %223 = vst.msk [vmem:[#allocation2] sm:$0xff] %vm34, %v215
    %224 = vst.msk [vmem:[#allocation2 + $0x8] sm:$0xff] %vm34, %v220
    // Predicated region
    $region22: #{tpu_custom_call.1} parent=1 // pred_check
      _
    $region23: #{tpu_custom_call.1} parent=1 // pred_check_branch
      %226 = sbr.rel (0) target = $region25
    $region24: #{tpu_custom_call.1} parent=1 // pred_region
      %s228 = ssub.s32 256, 256
      %229 = vsyncadd [#allocation3], %s228
      %s230 = sshll.u32 [#allocation2], 4
      %s231 = int_to_ptr.vmem [resolvable:$true] %s230
      %236 = dma.vmem_to_hbm [thread:$0]  %s231, 256, %s5, [#allocation3], 128, 128, 8
    $region25: #{tpu_custom_call.1} parent=1 // pred_fallthru
      _
    // Predicated region
    $region26: #{tpu_custom_call.1} parent=1 // pred_check
      _
    $region27: #{tpu_custom_call.1} parent=1 // pred_check_branch
      %238 = sbr.rel (0) target = $region29
    $region28: #{tpu_custom_call.1} parent=1 // pred_region
      %239 = dma.done [#allocation3], 256
    $region29: #{tpu_custom_call.1} parent=1 // pred_fallthru
      _
    %240 = vsyncpa [#allocation3], 1

</llo_original>
